<compile_context>
chip_gen: v7x
topology: tpu7x:2x2x1
jax: 0.10.0
libtpu: 0.0.40
codegen_flags: <defaults>
</compile_context>

<pallas_src>
import functools

import jax
import jax.numpy as jnp
from jax import lax
from jax.experimental import pallas as pl
from jax.experimental.pallas import tpu as pltpu


def _concat_pool_kernel(k2, inv_k2, has_pad, win_ref, out_ref):
    """Reduce the k2 = ks*ks window-offset slabs into a fused (max, avg) output.

    win_ref: (k2, 1, C_blk, tho, Wo)  single window stack (-inf where padded)
    out_ref: (1, 2, C_blk, tho, Wo)   [:, 0] = maxpool, [:, 1] = avgpool
    """
    x0 = win_ref[0, 0]                                   # (C_blk, tho, Wo)
    mx = x0
    if has_pad:
        # -inf marks padding; for the mean it must contribute 0 (count_include_pad).
        sm = jnp.where(x0 == -jnp.inf, 0.0, x0.astype(jnp.float32))
    else:
        sm = x0.astype(jnp.float32)
    for k in range(1, k2):                               # static unroll over window
        xk = win_ref[k, 0]
        mx = jnp.maximum(mx, xk)
        if has_pad:
            sm = sm + jnp.where(xk == -jnp.inf, 0.0, xk.astype(jnp.float32))
        else:
            sm = sm + xk.astype(jnp.float32)
    out_ref[0, 0] = mx
    out_ref[0, 1] = (sm * inv_k2).astype(out_ref.dtype)


def _pick_h_tile(ho, cap):
    """Largest divisor of ho that is a multiple of 8 (sublane rule) and <= cap.
    Falls back to the full extent, which is always a legal block dim."""
    for d in range(min(ho, max(cap, 1)), 0, -1):
        if ho % d == 0 and d % 8 == 0:
            return d
    return ho


def _largest_divisor_leq(n, cap):
    d = max(1, min(n, cap))
    while n % d:
        d -= 1
    return d


def concat_pool2d(x, ks, stride=None, padding=0, block_budget_bytes=2 * 1024 * 1024):
    """ConcatPool2d forward. x is NCHW; result is (N, 2*C, H_out, W_out)."""
    if not jnp.issubdtype(x.dtype, jnp.floating):
        raise TypeError("concat_pool2d supports floating dtypes only "
                        "(-inf padding / f32 mean accumulation).")
    stride = ks if stride is None else stride
    N, C, H, W = x.shape
    Ho = (H + 2 * padding - ks) // stride + 1
    Wo = (W + 2 * padding - ks) // stride + 1
    k2 = ks * ks

    # Pad once: -inf is correct for max; the kernel masks it to 0 for the mean.
    if padding > 0:
        x_p = jnp.pad(x, ((0, 0), (0, 0), (padding, padding), (padding, padding)),
                      constant_values=-jnp.inf)
    else:
        x_p = x

    # Single window stack (space-to-depth): (k2, N, C, Ho, Wo).  For stride == ks
    # this is an exact partition of the input (no duplicated bytes).
    slabs = []
    for kh in range(ks):
        for kw in range(ks):
            slabs.append(lax.slice(
                x_p,
                (0, 0, kh, kw),
                (N, C, kh + (Ho - 1) * stride + 1, kw + (Wo - 1) * stride + 1),
                (1, 1, stride, stride)))
    win = jnp.stack(slabs, axis=0)

    # Tile H_out (spatial parallel axis for megacore / v7x 64 MiB VMEM) and
    # channels if needed, keeping the double-buffered blocks well under VMEM.
    itemsize = jnp.dtype(x.dtype).itemsize
    rows_cap = max(8, block_budget_bytes // max(1, k2 * C * Wo * itemsize))
    tho = _pick_h_tile(Ho, rows_cap)
    c_cap = max(1, block_budget_bytes // max(1, k2 * tho * Wo * itemsize))
    C_blk = _largest_divisor_leq(C, c_cap)

    grid = (N, C // C_blk, Ho // tho)
    in_spec = pl.BlockSpec((k2, 1, C_blk, tho, Wo), lambda n, c, h: (0, n, c, h, 0))
    out_spec = pl.BlockSpec((1, 2, C_blk, tho, Wo), lambda n, c, h: (n, 0, c, h, 0))

    kernel = functools.partial(_concat_pool_kernel, k2, 1.0 / k2, padding > 0)
    out = pl.pallas_call(
        kernel,
        out_shape=jax.ShapeDtypeStruct((N, 2, C, Ho, Wo), x.dtype),
        grid_spec=pl.GridSpec(grid=grid, in_specs=[in_spec], out_specs=out_spec),
        compiler_params=pltpu.CompilerParams(
            dimension_semantics=("parallel", "parallel", "parallel"),
            vmem_limit_bytes=32 * 1024 * 1024),
    )(win)

    # (N, 2, C, Ho, Wo) -> (N, 2C, Ho, Wo): free reshape of adjacent dims,
    # i.e. torch.cat([maxpool, avgpool], dim=1) with no extra memory pass.
    return out.reshape(N, 2 * C, Ho, Wo)


if __name__ == "__main__":
    key = jax.random.PRNGKey(0)
    x = jax.random.normal(key, (2, 4, 16, 16), dtype=jnp.float32)  # NCHW

    # Case 1: ConcatPool2d(ks=2) -> stride defaults to ks, padding=0.
    out = jax.block_until_ready(concat_pool2d(x, ks=2))
    mp = lax.reduce_window(x, -jnp.inf, lax.max, (1, 1, 2, 2), (1, 1, 2, 2), "VALID")
    ap = lax.reduce_window(x, 0.0, lax.add, (1, 1, 2, 2), (1, 1, 2, 2), "VALID") / 4.0
    ref = jnp.concatenate([mp, ap], axis=1)
    assert out.shape == ref.shape == (2, 8, 8, 8), out.shape
    assert out.dtype == x.dtype
    assert jnp.allclose(out, ref, atol=1e-5, rtol=1e-5), "mismatch (ks=2)"

    # Case 2: ks=3, stride=2, padding=1 (overlapping windows + -inf padding path).
    out2 = jax.block_until_ready(concat_pool2d(x, ks=3, stride=2, padding=1))
    pad = ((0, 0), (0, 0), (1, 1), (1, 1))
    mp2 = lax.reduce_window(x, -jnp.inf, lax.max, (1, 1, 3, 3), (1, 1, 2, 2), pad)
    ap2 = lax.reduce_window(x, 0.0, lax.add, (1, 1, 3, 3), (1, 1, 2, 2), pad) / 9.0
    ref2 = jnp.concatenate([mp2, ap2], axis=1)
    assert out2.shape == ref2.shape == (2, 8, 8, 8), out2.shape
    assert jnp.allclose(out2, ref2, atol=1e-5, rtol=1e-5), "mismatch (ks=3,s=2,p=1)"

    print("KERNEL_OK")
</pallas_src>

<mosaic_0001>
module attributes {stable_mosaic.version = 11 : i64} {
  func.func @_concat_pool_kernel(%arg0: i32, %arg1: i32, %arg2: i32, %arg3: memref<4x1x4x8x8xf32, #tpu.memory_space<vmem>>, %arg4: memref<1x2x4x8x8xf32, #tpu.memory_space<vmem>>) attributes {dimension_semantics = [#tpu.dimension_semantics<parallel>, #tpu.dimension_semantics<parallel>, #tpu.dimension_semantics<parallel>], iteration_bounds = array<i64: 2, 1, 1>, scalar_prefetch = 0 : i64, scratch_operands = 0 : i64, tpu.core_type = #tpu.core_type<tc>, window_params = [{transform_indices = @transform_0, window_bounds = array<i64: 4, 1, 4, 8, 8>}, {transform_indices = @transform_1, window_bounds = array<i64: 1, 2, 4, 8, 8>}]} {
    %c0 = arith.constant 0 : index
    %c0_0 = arith.constant 0 : index
    %c0_1 = arith.constant 0 : index
    %c0_2 = arith.constant 0 : index
    %c0_3 = arith.constant 0 : index
    %0 = vector.load %arg3[%c0, %c0_0, %c0_1, %c0_2, %c0_3] : memref<4x1x4x8x8xf32, #tpu.memory_space<vmem>>, vector<1x1x4x8x8xf32>
    %1 = vector.shape_cast %0 : vector<1x1x4x8x8xf32> to vector<4x8x8xf32>
    %c1 = arith.constant 1 : index
    %c0_4 = arith.constant 0 : index
    %c0_5 = arith.constant 0 : index
    %c0_6 = arith.constant 0 : index
    %c0_7 = arith.constant 0 : index
    %2 = vector.load %arg3[%c1, %c0_4, %c0_5, %c0_6, %c0_7] : memref<4x1x4x8x8xf32, #tpu.memory_space<vmem>>, vector<1x1x4x8x8xf32>
    %3 = vector.shape_cast %2 : vector<1x1x4x8x8xf32> to vector<4x8x8xf32>
    %4 = arith.maximumf %1, %3 : vector<4x8x8xf32>
    %5 = arith.addf %1, %3 : vector<4x8x8xf32>
    %c2 = arith.constant 2 : index
    %c0_8 = arith.constant 0 : index
    %c0_9 = arith.constant 0 : index
    %c0_10 = arith.constant 0 : index
    %c0_11 = arith.constant 0 : index
    %6 = vector.load %arg3[%c2, %c0_8, %c0_9, %c0_10, %c0_11] : memref<4x1x4x8x8xf32, #tpu.memory_space<vmem>>, vector<1x1x4x8x8xf32>
    %7 = vector.shape_cast %6 : vector<1x1x4x8x8xf32> to vector<4x8x8xf32>
    %8 = arith.maximumf %4, %7 : vector<4x8x8xf32>
    %9 = arith.addf %5, %7 : vector<4x8x8xf32>
    %c3 = arith.constant 3 : index
    %c0_12 = arith.constant 0 : index
    %c0_13 = arith.constant 0 : index
    %c0_14 = arith.constant 0 : index
    %c0_15 = arith.constant 0 : index
    %10 = vector.load %arg3[%c3, %c0_12, %c0_13, %c0_14, %c0_15] : memref<4x1x4x8x8xf32, #tpu.memory_space<vmem>>, vector<1x1x4x8x8xf32>
    %11 = vector.shape_cast %10 : vector<1x1x4x8x8xf32> to vector<4x8x8xf32>
    %12 = arith.maximumf %8, %11 : vector<4x8x8xf32>
    %13 = arith.addf %9, %11 : vector<4x8x8xf32>
    %c0_16 = arith.constant 0 : index
    %c0_17 = arith.constant 0 : index
    %c0_18 = arith.constant 0 : index
    %c0_19 = arith.constant 0 : index
    %c0_20 = arith.constant 0 : index
    %14 = vector.load %arg4[%c0_16, %c0_17, %c0_18, %c0_19, %c0_20] : memref<1x2x4x8x8xf32, #tpu.memory_space<vmem>>, vector<1x1x4x8x8xf32>
    %15 = vector.shape_cast %14 : vector<1x1x4x8x8xf32> to vector<4x8x8xf32>
    %16 = vector.shape_cast %12 : vector<4x8x8xf32> to vector<1x1x4x8x8xf32>
    tpu.vector_store %arg4[%c0_16, %c0_17, %c0_18, %c0_19, %c0_20], %16 {strides = array<i32>} : memref<1x2x4x8x8xf32, #tpu.memory_space<vmem>>, vector<1x1x4x8x8xf32>,
    %cst = arith.constant 2.500000e-01 : f32
    %17 = vector.broadcast %cst : f32 to vector<4x8x8xf32>
    %18 = arith.mulf %13, %17 : vector<4x8x8xf32>
    %c0_21 = arith.constant 0 : index
    %c1_22 = arith.constant 1 : index
    %c0_23 = arith.constant 0 : index
    %c0_24 = arith.constant 0 : index
    %c0_25 = arith.constant 0 : index
    %19 = vector.load %arg4[%c0_21, %c1_22, %c0_23, %c0_24, %c0_25] : memref<1x2x4x8x8xf32, #tpu.memory_space<vmem>>, vector<1x1x4x8x8xf32>
    %20 = vector.shape_cast %19 : vector<1x1x4x8x8xf32> to vector<4x8x8xf32>
    %21 = vector.shape_cast %18 : vector<4x8x8xf32> to vector<1x1x4x8x8xf32>
    tpu.vector_store %arg4[%c0_21, %c1_22, %c0_23, %c0_24, %c0_25], %21 {strides = array<i32>} : memref<1x2x4x8x8xf32, #tpu.memory_space<vmem>>, vector<1x1x4x8x8xf32>,
    return
  }
  func.func @transform_0(%arg0: i32, %arg1: i32, %arg2: i32) -> (i32, i32, i32, i32, i32) {
    %c0_i32 = arith.constant 0 : i32
    %c0_i32_0 = arith.constant 0 : i32
    %c0_i32_1 = arith.constant 0 : i32
    return %c0_i32, %arg0, %arg1, %arg2, %c0_i32_0 : i32, i32, i32, i32, i32
  }
  func.func @transform_1(%arg0: i32, %arg1: i32, %arg2: i32) -> (i32, i32, i32, i32, i32) {
    %c0_i32 = arith.constant 0 : i32
    %c0_i32_0 = arith.constant 0 : i32
    %c0_i32_1 = arith.constant 0 : i32
    return %arg0, %c0_i32, %arg1, %arg2, %c0_i32_0 : i32, i32, i32, i32, i32
  }
}

</mosaic_0001>

<llo_original>
// kernel: tpu_custom_call.1
$region0: #{tpu_custom_call.1}
  #allocation0 [shape = 'u32[]', space=smem, size = 0x4, offset = 0x4, fixed_abs, tag = 'smem constant byte address 0x4 - core index']
  #allocation1 [shape = 'u32[144,128]{1,0:T(1,128)}', space=vmem, size = 0x12000, scoped, tag = 'internal scratch']
  #allocation6 [shape = 's32[]', space=sflag, size = 0x4, offset = 0, fixed_abs, tag = 'sflag constant byte address 0x0 - dummy sync flag']
  %s0 = inlined_call_operand.hbm [shape: f32[4,2,4,8,8], index: 0, kind: input, shape index: {}]
  %s1 = inlined_call_operand.hbm [shape: f32[2,2,4,8,8], index: 1, kind: output, shape index: {}]
  %s2 = sld [smem:[#allocation0]]
  $region41: #{tpu_custom_call.1} parent=0
    _
  %s4 = ssub.s32 1, %s2
  %s5 = scalar_select 0, %s4, %s2
  $region1: #{tpu_custom_call.1} parent=0
    #allocation2 [shape = 'u8[131072]{0}', space=vmem, size = 0x20000, scoped, tag = 'input window, operand 0']
    #allocation3 [shape = 's32[2]{0}', space=sflag, size = 0x8, scoped, tag = 'scoped memory for tpu_custom_call.1']
    #allocation4 [shape = 's32[2]{0}', space=sflag, size = 0x8, scoped, tag = 'scoped memory for tpu_custom_call.1']
    #allocation5 [shape = 'u8[65536]{0}', space=vmem, size = 0x10000, scoped, tag = 'output window, operand 0']
    %6 = vsyncpa [#allocation3], 0
    %s7 = scalar_lea.sflag [#allocation3], 1
    %8 = vsyncpa %s7, 0
    %9 = vsyncpa [#allocation4], 0
    %s10 = scalar_lea.sflag [#allocation4], 1
    %11 = vsyncpa %s10, 0
    loop: start=0, step=1, limit=4
    $region2: #{tpu_custom_call.1} parent=1 // loop_pre_header
      _
    $region3: #{tpu_custom_call.1} parent=1 // loop_header
      %s13 = sphi 0, %s17
      %p14 = scmp.ge.s32.totalorder %s13, 4
      %s20 = sphi 0, %s39
      %s21 = sphi 0, %s35
      %s22 = sphi 0, %s31
      %s23 = sphi 0, %s20
      %s24 = sphi 0, %s21
      %s25 = sphi 0, %s22
      %s26 = sphi 0, %s23
      %s27 = sphi 0, %s24
      %s28 = sphi 0, %s25
      %s46 = sphi 0, %s48
      %s49 = sphi 0, %s46
      %s50 = sphi 0, %s49
      %s66 = sphi 0, %s50
      %s76 = sphi 0, %s78
      %s79 = sphi 0, %s76
      %s80 = sphi 0, %s79
      %s96 = sphi 0, %s80
    $region4: #{tpu_custom_call.1} parent=1 // loop_header_branch
      %16 = sbr.rel (%p14) target = $region8
    $region5: #{tpu_custom_call.1} parent=1 // loop_body
      %s18 = ssub.s32 %s13, 1
      %s19 = ssub.s32 %s13, 2
      %s29 = sadd.s32 1, %s22
      %p30 = scmp.ge.s32.totalorder %s29, 1
      %s31 = scalar_select %p30, 0, %s29
      %s32 = sadd.s32 1, %s21
      %s33 = scalar_select %p30, %s32, %s21
      %p34 = scmp.ge.s32.totalorder %s33, 1
      %s35 = scalar_select %p34, 0, %s33
      %s36 = sadd.s32 1, %s20
      %s37 = scalar_select %p34, %s36, %s20
      %p38 = scmp.ge.s32.totalorder %s37, 2
      %s39 = scalar_select %p38, 0, %s37
      %s40 = ssub.s32 %s20, %s39
      %s41 = ssub.s32 %s21, %s35
      %s42 = sor.u32 %s40, %s41
      %s43 = ssub.s32 %s22, %s31
      %s44 = sor.u32 %s42, %s43
      %p45 = scmp.eq.s32.totalorder %s44, 0
      %s47 = sadd.s32 %s46, 1
      %s48 = scalar_select %p45, %s46, %s47
      %p51 = pneg %p45
      %p52 = scmp.eq.s32.totalorder %s13, 1
      %p53 = por %p51, %p52
      %p54 = scmp.ne.s32.totalorder %s46, %s49
      %p55 = scmp.eq.s32.totalorder %s13, 0
      %p56 = por %p54, %p55
      %p57 = scmp.ne.s32.totalorder %s46, %s49
      %p58 = scmp.eq.s32.totalorder %s18, 1
      %p59 = por %p57, %p58
      %p60 = scmp.ne.s32.totalorder %s49, %s50
      %p61 = scmp.eq.s32.totalorder %s18, 0
      %p62 = por %p60, %p61
      %p63 = scmp.ne.s32.totalorder %s49, %s50
      %p64 = scmp.eq.s32.totalorder %s19, 1
      %p65 = por %p63, %p64
      %p67 = scmp.ne.s32.totalorder %s50, %s66
      %p68 = scmp.eq.s32.totalorder %s19, 0
      %p69 = por %p67, %p68
      %s70 = ssub.s32 %s20, %s39
      %s71 = ssub.s32 %s21, %s35
      %s72 = sor.u32 %s70, %s71
      %s73 = ssub.s32 %s22, %s31
      %s74 = sor.u32 %s72, %s73
      %p75 = scmp.eq.s32.totalorder %s74, 0
      %s77 = sadd.s32 %s76, 1
      %s78 = scalar_select %p75, %s76, %s77
      %p81 = pneg %p75
      %p82 = scmp.eq.s32.totalorder %s13, 1
      %p83 = por %p81, %p82
      %p84 = scmp.ne.s32.totalorder %s76, %s79
      %p85 = scmp.eq.s32.totalorder %s13, 0
      %p86 = por %p84, %p85
      %p87 = scmp.ne.s32.totalorder %s76, %s79
      %p88 = scmp.eq.s32.totalorder %s18, 1
      %p89 = por %p87, %p88
      %p90 = scmp.ne.s32.totalorder %s79, %s80
      %p91 = scmp.eq.s32.totalorder %s18, 0
      %p92 = por %p90, %p91
      %p93 = scmp.ne.s32.totalorder %s79, %s80
      %p94 = scmp.eq.s32.totalorder %s19, 1
      %p95 = por %p93, %p94
      %p97 = scmp.ne.s32.totalorder %s80, %s96
      %p98 = scmp.eq.s32.totalorder %s19, 0
      %p99 = por %p97, %p98
      %p100 = scmp.le.s32.totalorder 1, %s13
      %p101 = scmp.lt.s32.totalorder %s13, 3
      %p102 = pnand %p100, %p101
      %p103 = pneg %p102
      // Predicated region
      $region9: #{tpu_custom_call.1} parent=5 // pred_check
        _
      $region10: #{tpu_custom_call.1} parent=5 // pred_check_branch
        %105 = sbr.rel (%p102) target = $region12
      $region11: #{tpu_custom_call.1} parent=5 // pred_region
        %s106 = ssub.s32 %s13, 1
      $region12: #{tpu_custom_call.1} parent=5 // pred_fallthru
        _
      %p107 = scmp.lt.s32.totalorder %s13, 2
      // Predicated region
      $region13: #{tpu_custom_call.1} parent=5 // pred_check
        %p108 = pneg %p107
      $region14: #{tpu_custom_call.1} parent=5 // pred_check_branch
        %110 = sbr.rel (%p108) target = $region16
      $region15: #{tpu_custom_call.1} parent=5 // pred_region
        // Predicated region
        $region17: #{tpu_custom_call.1} parent=15 // pred_check
          %p111 = pneg %p56
        $region18: #{tpu_custom_call.1} parent=15 // pred_check_branch
          %113 = sbr.rel (%p111) target = $region20
        $region19: #{tpu_custom_call.1} parent=15 // pred_region
          #allocation7 [shape = 'u32[6]{0}', space=smem, size = 0x18, scoped, tag = 'DMA stride descriptor']
          %s114 = sand.u32 %s46, 1
          %s115 = scalar_lea.sflag [#allocation3], %s114
          %s116 = sand.u32 %s46, 1
          %s117 = smul.addr %s116, 128
          %s118 = scalar_lea.vmem [#allocation2], %s117
          %s119 = smul.u32 4, %s21
          %s121 = ssub.s32 2048, 2048
          %122 = vsyncadd %s115, %s121
          %s123 = sadd.s32 %s22, %s119
          %s124 = smul.addr %s20, 4
          %s125 = sadd.s32 %s123, %s124
          %s126 = smul.addr %s125, 128
          %s127 = scalar_lea.hbm %s0, %s126
          %s129 = sshll.u32 1, 14
          %s130 = sxor.u32 4294967295, %s129
          %s132 = sld [smem:[#allocation0]]
          %s133 = sadd.s32 2, %s132
          %s135 = sshll.u32 7, 26
          %s136 = sxor.u32 4294967295, %s135
          %s137 = sand.u32 0, %s136
          %s138 = sshll.u32 %s133, 26
          %s139 = sor.u32 %s137, %s138
          %s140 = sshll.u32 %s118, 4
          %s141 = int_to_ptr.vmem [resolvable:$true] %s140
          %147 = sst [smem:[#allocation7]] 1024
          %s148 = scalar_lea.smem [#allocation7], 1
          %149 = sst [smem:[%s148]] 512
          %s150 = scalar_lea.smem [#allocation7], 2
          %151 = sst [smem:[%s150]] 4
          %s152 = scalar_lea.smem [#allocation7], 3
          %153 = sst [smem:[%s152]] 128
          %s154 = scalar_lea.smem [#allocation7], 4
          %155 = sst [smem:[%s154]] 128
          %s156 = scalar_lea.smem [#allocation7], 5
          %157 = sst [smem:[%s156]] 8
          %159 = dma.general %s127, 2048, %s141, %s115, [#allocation6], [#allocation7], %s139, 0
        $region20: #{tpu_custom_call.1} parent=15 // pred_fallthru
          _
      $region16: #{tpu_custom_call.1} parent=5 // pred_fallthru
        _
      %p160 = scmp.le.s32.totalorder 1, %s13
      %p161 = scmp.lt.s32.totalorder %s13, 3
      %p162 = pnand %p160, %p161
      %p163 = pneg %p162
      // Predicated region
      $region21: #{tpu_custom_call.1} parent=5 // pred_check
        _
      $region22: #{tpu_custom_call.1} parent=5 // pred_check_branch
        %165 = sbr.rel (%p162) target = $region24
      $region23: #{tpu_custom_call.1} parent=5 // pred_region
        %s166 = ssub.s32 %s13, 1
        %s167 = sand.u32 %s49, 1
        %s168 = scalar_lea.sflag [#allocation3], %s167
        %s169 = sand.u32 %s49, 1
        %s170 = smul.addr %s169, 128
        %s171 = scalar_lea.vmem [#allocation2], %s170
        // Predicated region
        $region25: #{tpu_custom_call.1} parent=23 // pred_check
          %p172 = pneg %p62
        $region26: #{tpu_custom_call.1} parent=23 // pred_check_branch
          %174 = sbr.rel (%p172) target = $region28
        $region27: #{tpu_custom_call.1} parent=23 // pred_region
          %175 = dma.done %s168, 2048
        $region28: #{tpu_custom_call.1} parent=23 // pred_fallthru
          _
        %s176 = sand.u32 %s49, 1
        %s177 = scalar_lea.sflag [#allocation3], %s176
        %s178 = sand.u32 %s49, 1
        %s179 = smul.addr %s178, 128
        %s180 = scalar_lea.vmem [#allocation2], %s179
        %p181 = pneg %p62
        %p182 = pneg %p59
        %p183 = pneg %p92
        %p184 = pneg %p89
        %s185 = sand.u32 %s79, 1
        %s186 = scalar_lea.sflag [#allocation4], %s185
        %s187 = sand.u32 %s79, 1
        %s188 = smul.addr %s187, 64
        %s189 = scalar_lea.vmem [#allocation5], %s188
        %s190 = smul.u32 4, %s24
        %s191 = smul.u32 4, %s24
        %v192 = vld [vmem:[%s171] sm:$0xff]
        %v193 = vld [vmem:[%s171 + $0x8] sm:$0xff]
        %v194 = vld [vmem:[%s171 + $0x10] sm:$0xff]
        %v195 = vld [vmem:[%s171 + $0x18] sm:$0xff]
        %s196 = scalar_lea.vmem %s171, 32 [#allocation2]
        %v197 = vld [vmem:[%s196] sm:$0xff]
        %v198 = vld [vmem:[%s196 + $0x8] sm:$0xff]
        %v199 = vld [vmem:[%s196 + $0x10] sm:$0xff]
        %v200 = vld [vmem:[%s196 + $0x18] sm:$0xff]
        %v201 = vmax.f32 %v192, %v197
        %v202 = vmax.f32 %v193, %v198
        %v203 = vmax.f32 %v194, %v199
        %v204 = vmax.f32 %v195, %v200
        %v205 = vadd.f32 %v192, %v197
        %v206 = vadd.f32 %v193, %v198
        %v207 = vadd.f32 %v194, %v199
        %v208 = vadd.f32 %v195, %v200
        %s209 = scalar_lea.vmem %s171, 64 [#allocation2]
        %v210 = vld [vmem:[%s209] sm:$0xff]
        %v211 = vld [vmem:[%s209 + $0x8] sm:$0xff]
        %v212 = vld [vmem:[%s209 + $0x10] sm:$0xff]
        %v213 = vld [vmem:[%s209 + $0x18] sm:$0xff]
        %v214 = vmax.f32 %v201, %v210
        %v215 = vmax.f32 %v202, %v211
        %v216 = vmax.f32 %v203, %v212
        %v217 = vmax.f32 %v204, %v213
        %v218 = vadd.f32 %v205, %v210
        %v219 = vadd.f32 %v206, %v211
        %v220 = vadd.f32 %v207, %v212
        %v221 = vadd.f32 %v208, %v213
        %s222 = scalar_lea.vmem %s171, 96 [#allocation2]
        %v223 = vld [vmem:[%s222] sm:$0xff]
        %v224 = vld [vmem:[%s222 + $0x8] sm:$0xff]
        %v225 = vld [vmem:[%s222 + $0x10] sm:$0xff]
        %v226 = vld [vmem:[%s222 + $0x18] sm:$0xff]
        %v227 = vmax.f32 %v214, %v223
        %v228 = vmax.f32 %v215, %v224
        %v229 = vmax.f32 %v216, %v225
        %v230 = vmax.f32 %v217, %v226
        %v231 = vadd.f32 %v218, %v223
        %v232 = vadd.f32 %v219, %v224
        %v233 = vadd.f32 %v220, %v225
        %v234 = vadd.f32 %v221, %v226
        %vm235 = vcmask 64512
        %236 = vst.msk [vmem:[%s189] sm:$0xff] %vm235, %v227
        %237 = vst.msk [vmem:[%s189 + $0x8] sm:$0xff] %vm235, %v228
        %238 = vst.msk [vmem:[%s189 + $0x10] sm:$0xff] %vm235, %v229
        %239 = vst.msk [vmem:[%s189 + $0x18] sm:$0xff] %vm235, %v230
        %v240 = vmul.f32 %v231, 0.25
        %v241 = vmul.f32 %v232, 0.25
        %v242 = vmul.f32 %v233, 0.25
        %v243 = vmul.f32 %v234, 0.25
        %s244 = scalar_lea.vmem %s189, 32 [#allocation5]
        %245 = vst.msk [vmem:[%s244] sm:$0xff] %vm235, %v240
        %246 = vst.msk [vmem:[%s244 + $0x8] sm:$0xff] %vm235, %v241
        %247 = vst.msk [vmem:[%s244 + $0x10] sm:$0xff] %vm235, %v242
        %248 = vst.msk [vmem:[%s244 + $0x18] sm:$0xff] %vm235, %v243
        %s249 = sand.u32 %s79, 1
        %s250 = scalar_lea.sflag [#allocation4], %s249
        %s251 = sand.u32 %s79, 1
        %s252 = smul.addr %s251, 64
        %s253 = scalar_lea.vmem [#allocation5], %s252
        // Predicated region
        $region29: #{tpu_custom_call.1} parent=23 // pred_check
          %p254 = pneg %p89
        $region30: #{tpu_custom_call.1} parent=23 // pred_check_branch
          %256 = sbr.rel (%p254) target = $region32
        $region31: #{tpu_custom_call.1} parent=23 // pred_region
          %s257 = smul.u32 4, %s24
          %s259 = ssub.s32 1024, 1024
          %260 = vsyncadd %s250, %s259
          %s261 = sadd.s32 %s25, %s257
          %s262 = smul.addr %s23, 8
          %s263 = sadd.s32 %s261, %s262
          %s264 = smul.addr %s263, 128
          %s265 = scalar_lea.hbm %s1, %s264
          %s266 = sshll.u32 %s253, 4
          %s267 = int_to_ptr.vmem [resolvable:$true] %s266
          %272 = dma.vmem_to_hbm [thread:$0]  %s267, 1024, %s265, %s250, 128, 128, 8
        $region32: #{tpu_custom_call.1} parent=23 // pred_fallthru
          _
      $region24: #{tpu_custom_call.1} parent=5 // pred_fallthru
        _
      %p273 = scmp.le.s32.totalorder 2, %s13
      // Predicated region
      $region33: #{tpu_custom_call.1} parent=5 // pred_check
        %p274 = pneg %p273
      $region34: #{tpu_custom_call.1} parent=5 // pred_check_branch
        %276 = sbr.rel (%p274) target = $region36
      $region35: #{tpu_custom_call.1} parent=5 // pred_region
        %s277 = ssub.s32 %s13, 2
        // Predicated region
        $region37: #{tpu_custom_call.1} parent=35 // pred_check
          %p278 = pneg %p95
        $region38: #{tpu_custom_call.1} parent=35 // pred_check_branch
          %280 = sbr.rel (%p278) target = $region40
        $region39: #{tpu_custom_call.1} parent=35 // pred_region
          %s281 = sand.u32 %s80, 1
          %s282 = scalar_lea.sflag [#allocation4], %s281
          %s283 = sand.u32 %s80, 1
          %s284 = smul.addr %s283, 64
          %s285 = scalar_lea.vmem [#allocation5], %s284
          %286 = dma.done %s282, 1024
        $region40: #{tpu_custom_call.1} parent=35 // pred_fallthru
          _
      $region36: #{tpu_custom_call.1} parent=5 // pred_fallthru
        _
    $region6: #{tpu_custom_call.1} parent=1 // loop_footer
      %s17 = sadd.s32 1, %s13
    $region7: #{tpu_custom_call.1} parent=1 // loop_footer_branch
      %12 = sbr.rel target = $region3
    $region8: #{tpu_custom_call.1} parent=1 // loop_exit
      _
    %287 = vsyncpa [#allocation3], 1
    %s288 = scalar_lea.sflag [#allocation3], 1
    %289 = vsyncpa %s288, 1
    %290 = vsyncpa [#allocation4], 1
    %s291 = scalar_lea.sflag [#allocation4], 1
    %292 = vsyncpa %s291, 1

</llo_original>
